<compile_context>
chip_gen: v7x
topology: tpu7x:2x2x1
jax: 0.10.0
libtpu: 0.0.40
codegen_flags: <defaults>
</compile_context>

<pallas_src>
import functools

import numpy as np
import jax
import jax.numpy as jnp
from jax.experimental import pallas as pl
from jax.experimental.pallas import tpu as pltpu


# ---------------------------------------------------------------------------
# Kernel
# ---------------------------------------------------------------------------
def vae_kernel(
    x_ref,
    w1_ref, b1_ref,
    wmulv_ref, bmulv_ref,     # fused [hidden, 2*latent] mu||logvar head
    w3_ref, b3_ref,           # fc3 [latent, hidden] (unpadded K)
    w4_ref, b4_ref,
    eps_ref,
    recon_ref, mulv_ref,
    *, latent_dim,
):
    # encode: h1 = relu(fc1(x))   -- bf16 MXU operands, f32 accumulate
    x = x_ref[...].astype(jnp.bfloat16)
    h1 = jnp.dot(x, w1_ref[...], preferred_element_type=jnp.float32) + b1_ref[...]
    h1 = jnp.maximum(h1, 0.0)

    # fused mu || logvar head: single 2*latent-lane matmul (lane-dense)
    mulv = jnp.dot(h1.astype(jnp.bfloat16), wmulv_ref[...],
                   preferred_element_type=jnp.float32) + bmulv_ref[...]
    mu = mulv[:, :latent_dim]
    logvar = mulv[:, latent_dim:]

    # reparameterize: z = mu + eps * exp(0.5 * logvar)   (all f32 elementwise)
    std = jnp.exp(0.5 * logvar)
    z = mu + eps_ref[...].astype(jnp.float32) * std

    # decode: recon = fc4(relu(fc3(z)))   -- K=latent, no padding / no concat
    h3 = jnp.dot(z.astype(jnp.bfloat16), w3_ref[...],
                 preferred_element_type=jnp.float32) + b3_ref[...]
    h3 = jnp.maximum(h3, 0.0)
    recon = jnp.dot(h3.astype(jnp.bfloat16), w4_ref[...],
                    preferred_element_type=jnp.float32) + b4_ref[...]

    recon_ref[...] = recon.astype(recon_ref.dtype)
    mulv_ref[...] = mulv          # lane-dense [TB, 2*latent] store


# ---------------------------------------------------------------------------
# Parameter packing
# ---------------------------------------------------------------------------
def pack_params(params):
    """Fuse mu/logvar heads and cast weights to bf16 (biases stay f32)."""
    wmulv = jnp.concatenate([params["wmu"], params["wlv"]], axis=1)
    bmulv = jnp.concatenate([params["bmu"], params["blv"]], axis=1)
    bf16 = lambda w: w.astype(jnp.bfloat16)
    f32 = lambda b: b.astype(jnp.float32)
    return dict(
        w1=bf16(params["w1"]), b1=f32(params["b1"]),
        wmulv=bf16(wmulv), bmulv=f32(bmulv),
        w3=bf16(params["w3"]), b3=f32(params["b3"]),
        w4=bf16(params["w4"]), b4=f32(params["b4"]),
    )


# ---------------------------------------------------------------------------
# Tile / VMEM heuristics
# ---------------------------------------------------------------------------
def _choose_batch_tile(B, block_b):
    """Pick a sublane-aligned batch tile; keep >=2 grid steps when B permits
    so the ("parallel",) batch axis can use both v7x TensorCores."""
    tb = min(block_b, B)
    if tb == B:
        if B >= 16:
            tb = (((B + 1) // 2) + 7) // 8 * 8   # ~B/2, rounded up to 8
        return tb
    tb = max(8, (tb // 8) * 8)                   # tb < B: must be multiple of 8
    return min(tb, B)


def _vmem_bytes_estimate(tb, input_dim, hidden_dim, latent_dim,
                         x_itemsize, recon_itemsize, packed):
    two_lat = 2 * latent_dim
    # double-buffered batch-tiled streams (x, eps, recon, mulv)
    tiles = 2 * tb * (input_dim * x_itemsize + latent_dim * 4
                      + input_dim * recon_itemsize + two_lat * 4)
    # resident weights/biases (default pipelining double-buffers them too)
    weights = 2 * sum(int(a.size) * a.dtype.itemsize for a in packed.values())
    # rough f32 intermediates: h1, mulv acc, z, h3, recon acc
    interm = tb * (2 * hidden_dim + two_lat + latent_dim + input_dim) * 4
    return tiles + weights + interm


# ---------------------------------------------------------------------------
# Wrapper
# ---------------------------------------------------------------------------
def vae_forward(x, packed, eps, *, block_b=1024, recon_dtype=jnp.float32,
                vmem_limit_bytes=None):
    """x: [B, input_dim] (f32 or bf16); eps: [B, latent_dim] f32.

    Returns (recon [B, input_dim] in `recon_dtype`, mulv [B, 2*latent] f32
    packed as mu || logvar).  Slice mulv at the consumer (see split_mulv).
    """
    B, input_dim = x.shape
    latent_dim = eps.shape[1]
    hidden_dim = packed["w1"].shape[1]
    two_lat = 2 * latent_dim

    tb = _choose_batch_tile(B, block_b)
    grid = (pl.cdiv(B, tb),)

    def batch_tile(feat):
        # per-grid-step batch tile of the activation / noise / output arrays
        return pl.BlockSpec((tb, feat), lambda i: (i, 0))

    def resident(arr):
        # weights/biases: same block every grid step -> stay resident in VMEM
        return pl.BlockSpec(arr.shape, lambda i: (0,) * arr.ndim)

    in_specs = [
        batch_tile(input_dim),                              # x
        resident(packed["w1"]), resident(packed["b1"]),
        resident(packed["wmulv"]), resident(packed["bmulv"]),
        resident(packed["w3"]), resident(packed["b3"]),
        resident(packed["w4"]), resident(packed["b4"]),
        batch_tile(latent_dim),                             # eps
    ]
    out_specs = (batch_tile(input_dim), batch_tile(two_lat))
    out_shape = (
        jax.ShapeDtypeStruct((B, input_dim), recon_dtype),   # recon
        jax.ShapeDtypeStruct((B, two_lat), jnp.float32),      # mu || logvar
    )

    x_itemsize = np.dtype(x.dtype).itemsize
    recon_itemsize = np.dtype(recon_dtype).itemsize

    # Only raise the scoped-VMEM limit when the tile estimate needs it; cap at
    # 48 MiB (safe on v7x's 64 MiB physical VMEM).
    compiler_kwargs = dict(dimension_semantics=("parallel",))
    if vmem_limit_bytes is None:
        est = _vmem_bytes_estimate(tb, input_dim, hidden_dim, latent_dim,
                                   x_itemsize, recon_itemsize, packed)
        if est > 16 * 1024 * 1024:
            vmem_limit_bytes = min(int(est * 5 // 4), 48 * 1024 * 1024)
    if vmem_limit_bytes is not None:
        compiler_kwargs["vmem_limit_bytes"] = int(vmem_limit_bytes)

    # Advisory cost estimate for XLA's scheduler.
    mm_elems = (input_dim * hidden_dim + hidden_dim * two_lat
                + latent_dim * hidden_dim + hidden_dim * input_dim)
    weight_bytes = sum(int(a.size) * a.dtype.itemsize for a in packed.values())
    cost = pl.CostEstimate(
        flops=2 * B * mm_elems,
        transcendentals=B * latent_dim,
        bytes_accessed=(B * (input_dim * x_itemsize + latent_dim * 4
                             + input_dim * recon_itemsize + two_lat * 4)
                        + weight_bytes),
    )

    recon, mulv = pl.pallas_call(
        functools.partial(vae_kernel, latent_dim=latent_dim),
        grid=grid,
        in_specs=in_specs,
        out_specs=out_specs,
        out_shape=out_shape,
        compiler_params=pltpu.CompilerParams(**compiler_kwargs),
        cost_estimate=cost,
    )(
        x,
        packed["w1"], packed["b1"],
        packed["wmulv"], packed["bmulv"],
        packed["w3"], packed["b3"],
        packed["w4"], packed["b4"],
        eps,
    )
    return recon, mulv


def split_mulv(mulv, latent_dim):
    """Consumer-side split of the packed mu||logvar output."""
    return mulv[:, :latent_dim], mulv[:, latent_dim:]


# ---------------------------------------------------------------------------
# Init + references
# ---------------------------------------------------------------------------
def init_params(key, input_dim, hidden_dim, latent_dim):
    """PyTorch-like uniform fan-in init. Weights stored [in, out]; biases [1, out]."""
    def linear(k, fan_in, fan_out):
        kw, kb = jax.random.split(k)
        bound = 1.0 / jnp.sqrt(fan_in)
        w = jax.random.uniform(kw, (fan_in, fan_out), jnp.float32, -bound, bound)
        b = jax.random.uniform(kb, (1, fan_out), jnp.float32, -bound, bound)
        return w, b

    k1, k2, k3, k4, k5 = jax.random.split(key, 5)
    w1, b1 = linear(k1, input_dim, hidden_dim)
    wmu, bmu = linear(k2, hidden_dim, latent_dim)
    wlv, blv = linear(k3, hidden_dim, latent_dim)
    w3, b3 = linear(k4, latent_dim, hidden_dim)
    w4, b4 = linear(k5, hidden_dim, input_dim)
    return dict(w1=w1, b1=b1, wmu=wmu, bmu=bmu, wlv=wlv, blv=blv,
                w3=w3, b3=b3, w4=w4, b4=b4)


def vae_forward_ref_bf16(x, params, eps):
    """Reference emulating the kernel's bf16-operand / f32-accumulate matmuls."""
    def mm(a, w):
        return jnp.dot(a.astype(jnp.bfloat16), w.astype(jnp.bfloat16),
                       preferred_element_type=jnp.float32)
    h1 = jnp.maximum(mm(x, params["w1"]) + params["b1"], 0.0)
    mu = mm(h1, params["wmu"]) + params["bmu"]
    logvar = mm(h1, params["wlv"]) + params["blv"]
    z = mu + eps * jnp.exp(0.5 * logvar)
    h3 = jnp.maximum(mm(z, params["w3"]) + params["b3"], 0.0)
    recon = mm(h3, params["w4"]) + params["b4"]
    return recon, mu, logvar


def vae_forward_ref_f32(x, params, eps):
    """Pure f32 reference matching the original PyTorch module semantics."""
    h1 = jnp.maximum(x @ params["w1"] + params["b1"], 0.0)
    mu = h1 @ params["wmu"] + params["bmu"]
    logvar = h1 @ params["wlv"] + params["blv"]
    z = mu + eps * jnp.exp(0.5 * logvar)
    h3 = jnp.maximum(z @ params["w3"] + params["b3"], 0.0)
    recon = h3 @ params["w4"] + params["b4"]
    return recon, mu, logvar


# ---------------------------------------------------------------------------
if __name__ == "__main__":
    # Small VAE: input_dim=256, hidden_dim=128, latent_dim=64, batch=64
    B, input_dim, hidden_dim, latent_dim = 64, 256, 128, 64

    key = jax.random.PRNGKey(0)
    kx, keps, kparams = jax.random.split(key, 3)

    x_f32 = jax.random.normal(kx, (B, input_dim), jnp.float32)
    # producer-level bf16 input (halves the x HBM stream; kernel casts to bf16
    # at the MXU boundary anyway, so results match the bf16 reference)
    x = x_f32.astype(jnp.bfloat16)
    eps = jax.random.normal(keps, (B, latent_dim), jnp.float32)  # randn_like(std)
    params = init_params(kparams, input_dim, hidden_dim, latent_dim)
    packed = pack_params(params)

    # default block_b; tile chooser gives tb=32 -> grid=(2,), so both v7x TCs
    # get a batch shard even at this small B.
    recon, mulv = vae_forward(x, packed, eps)
    jax.block_until_ready((recon, mulv))
    mu, logvar = split_mulv(mulv, latent_dim)     # consumer-side split

    # tight check vs. bf16-emulating reference
    r_ref, mu_ref, lv_ref = vae_forward_ref_bf16(x_f32, params, eps)
    assert jnp.allclose(recon, r_ref, atol=1e-2, rtol=1e-2)
    assert jnp.allclose(mu, mu_ref, atol=1e-2, rtol=1e-2)
    assert jnp.allclose(logvar, lv_ref, atol=1e-2, rtol=1e-2)

    # loose sanity check vs. pure-f32 module semantics (bf16 operand noise)
    r32, mu32, lv32 = vae_forward_ref_f32(x_f32, params, eps)
    assert jnp.allclose(recon, r32, atol=1e-1, rtol=1e-1)
    assert jnp.allclose(mu, mu32, atol=1e-1, rtol=1e-1)
    assert jnp.allclose(logvar, lv32, atol=1e-1, rtol=1e-1)

    # reduced-HBM output path: recon emitted in bf16 (halves the recon stream)
    recon_bf16, mulv2 = vae_forward(x, packed, eps, recon_dtype=jnp.bfloat16)
    jax.block_until_ready((recon_bf16, mulv2))
    assert jnp.allclose(recon_bf16.astype(jnp.float32), r_ref, atol=5e-2, rtol=5e-2)
    assert jnp.allclose(mulv2, mulv, atol=1e-5, rtol=1e-5)

    print("KERNEL_OK")
</pallas_src>

<mosaic_0001>
module attributes {stable_mosaic.version = 11 : i64} {
  func.func @vae_kernel(%arg0: i32, %arg1: memref<32x256xbf16, #tpu.memory_space<vmem>>, %arg2: memref<256x128xbf16, #tpu.memory_space<vmem>>, %arg3: memref<1x128xf32, #tpu.memory_space<vmem>>, %arg4: memref<128x128xbf16, #tpu.memory_space<vmem>>, %arg5: memref<1x128xf32, #tpu.memory_space<vmem>>, %arg6: memref<64x128xbf16, #tpu.memory_space<vmem>>, %arg7: memref<1x128xf32, #tpu.memory_space<vmem>>, %arg8: memref<128x256xbf16, #tpu.memory_space<vmem>>, %arg9: memref<1x256xf32, #tpu.memory_space<vmem>>, %arg10: memref<32x64xf32, #tpu.memory_space<vmem>>, %arg11: memref<32x256xf32, #tpu.memory_space<vmem>>, %arg12: memref<32x128xf32, #tpu.memory_space<vmem>>) attributes {dimension_semantics = [#tpu.dimension_semantics<parallel>], iteration_bounds = array<i64: 2>, scalar_prefetch = 0 : i64, scratch_operands = 0 : i64, tpu.core_type = #tpu.core_type<tc>, window_params = [{transform_indices = @transform_0, window_bounds = array<i64: 32, 256>}, {pipeline_mode = #tpu.pipeline_mode<synchronous>, transform_indices = @transform_1, window_bounds = array<i64: 256, 128>}, {pipeline_mode = #tpu.pipeline_mode<synchronous>, transform_indices = @transform_2, window_bounds = array<i64: 1, 128>}, {pipeline_mode = #tpu.pipeline_mode<synchronous>, transform_indices = @transform_3, window_bounds = array<i64: 128, 128>}, {pipeline_mode = #tpu.pipeline_mode<synchronous>, transform_indices = @transform_4, window_bounds = array<i64: 1, 128>}, {pipeline_mode = #tpu.pipeline_mode<synchronous>, transform_indices = @transform_5, window_bounds = array<i64: 64, 128>}, {pipeline_mode = #tpu.pipeline_mode<synchronous>, transform_indices = @transform_6, window_bounds = array<i64: 1, 128>}, {pipeline_mode = #tpu.pipeline_mode<synchronous>, transform_indices = @transform_7, window_bounds = array<i64: 128, 256>}, {pipeline_mode = #tpu.pipeline_mode<synchronous>, transform_indices = @transform_8, window_bounds = array<i64: 1, 256>}, {transform_indices = @transform_9, window_bounds = array<i64: 32, 64>}, {transform_indices = @transform_10, window_bounds = array<i64: 32, 256>}, {transform_indices = @transform_11, window_bounds = array<i64: 32, 128>}]} {
    %c0 = arith.constant 0 : index
    %c0_0 = arith.constant 0 : index
    %0 = vector.load %arg1[%c0, %c0_0] : memref<32x256xbf16, #tpu.memory_space<vmem>>, vector<32x256xbf16>
    %c0_1 = arith.constant 0 : index
    %c0_2 = arith.constant 0 : index
    %1 = vector.load %arg2[%c0_1, %c0_2] : memref<256x128xbf16, #tpu.memory_space<vmem>>, vector<256x128xbf16>
    %cst = arith.constant dense<0.000000e+00> : vector<32x128xf32>
    %2 = tpu.matmul %0, %1, %cst {dimension_numbers = #tpu.dot_dimension_numbers<[1], [0], [0], [1], [0, 0, 1, 1], [], []>} : vector<32x256xbf16>, vector<256x128xbf16>, vector<32x128xf32> -> vector<32x128xf32>
    %c0_3 = arith.constant 0 : index
    %c0_4 = arith.constant 0 : index
    %3 = vector.load %arg3[%c0_3, %c0_4] : memref<1x128xf32, #tpu.memory_space<vmem>>, vector<1x128xf32>
    %4 = vector.broadcast %3 : vector<1x128xf32> to vector<32x128xf32>
    %5 = arith.addf %2, %4 : vector<32x128xf32>
    %cst_5 = arith.constant 0.000000e+00 : f32
    %6 = vector.broadcast %cst_5 : f32 to vector<32x128xf32>
    %7 = arith.maximumf %5, %6 : vector<32x128xf32>
    %8 = arith.truncf %7 : vector<32x128xf32> to vector<32x128xbf16>
    %c0_6 = arith.constant 0 : index
    %c0_7 = arith.constant 0 : index
    %9 = vector.load %arg4[%c0_6, %c0_7] : memref<128x128xbf16, #tpu.memory_space<vmem>>, vector<128x128xbf16>
    %cst_8 = arith.constant dense<0.000000e+00> : vector<32x128xf32>
    %10 = tpu.matmul %8, %9, %cst_8 {dimension_numbers = #tpu.dot_dimension_numbers<[1], [0], [0], [1], [0, 0, 1, 1], [], []>} : vector<32x128xbf16>, vector<128x128xbf16>, vector<32x128xf32> -> vector<32x128xf32>
    %c0_9 = arith.constant 0 : index
    %c0_10 = arith.constant 0 : index
    %11 = vector.load %arg5[%c0_9, %c0_10] : memref<1x128xf32, #tpu.memory_space<vmem>>, vector<1x128xf32>
    %12 = vector.broadcast %11 : vector<1x128xf32> to vector<32x128xf32>
    %13 = arith.addf %10, %12 : vector<32x128xf32>
    %14 = vector.extract_strided_slice %13 {offsets = [0, 0], sizes = [32, 64], strides = [1, 1]} : vector<32x128xf32> to vector<32x64xf32>
    %15 = vector.extract_strided_slice %13 {offsets = [0, 64], sizes = [32, 64], strides = [1, 1]} : vector<32x128xf32> to vector<32x64xf32>
    %cst_11 = arith.constant 5.000000e-01 : f32
    %16 = vector.broadcast %cst_11 : f32 to vector<32x64xf32>
    %17 = arith.mulf %16, %15 : vector<32x64xf32>
    %18 = math.exp %17 : vector<32x64xf32>
    %c0_12 = arith.constant 0 : index
    %c0_13 = arith.constant 0 : index
    %19 = vector.load %arg10[%c0_12, %c0_13] : memref<32x64xf32, #tpu.memory_space<vmem>>, vector<32x64xf32>
    %20 = arith.mulf %19, %18 : vector<32x64xf32>
    %21 = arith.addf %14, %20 : vector<32x64xf32>
    %22 = arith.truncf %21 : vector<32x64xf32> to vector<32x64xbf16>
    %c0_14 = arith.constant 0 : index
    %c0_15 = arith.constant 0 : index
    %23 = vector.load %arg6[%c0_14, %c0_15] : memref<64x128xbf16, #tpu.memory_space<vmem>>, vector<64x128xbf16>
    %cst_16 = arith.constant dense<0.000000e+00> : vector<32x128xf32>
    %24 = tpu.matmul %22, %23, %cst_16 {dimension_numbers = #tpu.dot_dimension_numbers<[1], [0], [0], [1], [0, 0, 1, 1], [], []>} : vector<32x64xbf16>, vector<64x128xbf16>, vector<32x128xf32> -> vector<32x128xf32>
    %c0_17 = arith.constant 0 : index
    %c0_18 = arith.constant 0 : index
    %25 = vector.load %arg7[%c0_17, %c0_18] : memref<1x128xf32, #tpu.memory_space<vmem>>, vector<1x128xf32>
    %26 = vector.broadcast %25 : vector<1x128xf32> to vector<32x128xf32>
    %27 = arith.addf %24, %26 : vector<32x128xf32>
    %cst_19 = arith.constant 0.000000e+00 : f32
    %28 = vector.broadcast %cst_19 : f32 to vector<32x128xf32>
    %29 = arith.maximumf %27, %28 : vector<32x128xf32>
    %30 = arith.truncf %29 : vector<32x128xf32> to vector<32x128xbf16>
    %c0_20 = arith.constant 0 : index
    %c0_21 = arith.constant 0 : index
    %31 = vector.load %arg8[%c0_20, %c0_21] : memref<128x256xbf16, #tpu.memory_space<vmem>>, vector<128x256xbf16>
    %cst_22 = arith.constant dense<0.000000e+00> : vector<32x256xf32>
    %32 = tpu.matmul %30, %31, %cst_22 {dimension_numbers = #tpu.dot_dimension_numbers<[1], [0], [0], [1], [0, 0, 1, 1], [], []>} : vector<32x128xbf16>, vector<128x256xbf16>, vector<32x256xf32> -> vector<32x256xf32>
    %c0_23 = arith.constant 0 : index
    %c0_24 = arith.constant 0 : index
    %33 = vector.load %arg9[%c0_23, %c0_24] : memref<1x256xf32, #tpu.memory_space<vmem>>, vector<1x256xf32>
    %34 = vector.broadcast %33 : vector<1x256xf32> to vector<32x256xf32>
    %35 = arith.addf %32, %34 : vector<32x256xf32>
    %c0_25 = arith.constant 0 : index
    %c0_26 = arith.constant 0 : index
    %36 = vector.load %arg11[%c0_25, %c0_26] : memref<32x256xf32, #tpu.memory_space<vmem>>, vector<32x256xf32>
    tpu.vector_store %arg11[%c0_25, %c0_26], %35 {strides = array<i32>} : memref<32x256xf32, #tpu.memory_space<vmem>>, vector<32x256xf32>,
    %c0_27 = arith.constant 0 : index
    %c0_28 = arith.constant 0 : index
    %37 = vector.load %arg12[%c0_27, %c0_28] : memref<32x128xf32, #tpu.memory_space<vmem>>, vector<32x128xf32>
    tpu.vector_store %arg12[%c0_27, %c0_28], %13 {strides = array<i32>} : memref<32x128xf32, #tpu.memory_space<vmem>>, vector<32x128xf32>,
    return
  }
  func.func @transform_0(%arg0: i32) -> (i32, i32) {
    %c0_i32 = arith.constant 0 : i32
    %c0_i32_0 = arith.constant 0 : i32
    return %arg0, %c0_i32 : i32, i32
  }
  func.func @transform_1(%arg0: i32) -> (i32, i32) {
    %c0_i32 = arith.constant 0 : i32
    %c0_i32_0 = arith.constant 0 : i32
    %c0_i32_1 = arith.constant 0 : i32
    return %c0_i32, %c0_i32_0 : i32, i32
  }
  func.func @transform_2(%arg0: i32) -> (i32, i32) {
    %c0_i32 = arith.constant 0 : i32
    %c0_i32_0 = arith.constant 0 : i32
    %c0_i32_1 = arith.constant 0 : i32
    return %c0_i32, %c0_i32_0 : i32, i32
  }
  func.func @transform_3(%arg0: i32) -> (i32, i32) {
    %c0_i32 = arith.constant 0 : i32
    %c0_i32_0 = arith.constant 0 : i32
    %c0_i32_1 = arith.constant 0 : i32
    return %c0_i32, %c0_i32_0 : i32, i32
  }
  func.func @transform_4(%arg0: i32) -> (i32, i32) {
    %c0_i32 = arith.constant 0 : i32
    %c0_i32_0 = arith.constant 0 : i32
    %c0_i32_1 = arith.constant 0 : i32
    return %c0_i32, %c0_i32_0 : i32, i32
  }
  func.func @transform_5(%arg0: i32) -> (i32, i32) {
    %c0_i32 = arith.constant 0 : i32
    %c0_i32_0 = arith.constant 0 : i32
    %c0_i32_1 = arith.constant 0 : i32
    return %c0_i32, %c0_i32_0 : i32, i32
  }
  func.func @transform_6(%arg0: i32) -> (i32, i32) {
    %c0_i32 = arith.constant 0 : i32
    %c0_i32_0 = arith.constant 0 : i32
    %c0_i32_1 = arith.constant 0 : i32
    return %c0_i32, %c0_i32_0 : i32, i32
  }
  func.func @transform_7(%arg0: i32) -> (i32, i32) {
    %c0_i32 = arith.constant 0 : i32
    %c0_i32_0 = arith.constant 0 : i32
    %c0_i32_1 = arith.constant 0 : i32
    return %c0_i32, %c0_i32_0 : i32, i32
  }
  func.func @transform_8(%arg0: i32) -> (i32, i32) {
    %c0_i32 = arith.constant 0 : i32
    %c0_i32_0 = arith.constant 0 : i32
    %c0_i32_1 = arith.constant 0 : i32
    return %c0_i32, %c0_i32_0 : i32, i32
  }
  func.func @transform_9(%arg0: i32) -> (i32, i32) {
    %c0_i32 = arith.constant 0 : i32
    %c0_i32_0 = arith.constant 0 : i32
    return %arg0, %c0_i32 : i32, i32
  }
  func.func @transform_10(%arg0: i32) -> (i32, i32) {
    %c0_i32 = arith.constant 0 : i32
    %c0_i32_0 = arith.constant 0 : i32
    return %arg0, %c0_i32 : i32, i32
  }
  func.func @transform_11(%arg0: i32) -> (i32, i32) {
    %c0_i32 = arith.constant 0 : i32
    %c0_i32_0 = arith.constant 0 : i32
    return %arg0, %c0_i32 : i32, i32
  }
}

</mosaic_0001>

<llo_original>
// kernel: tpu_custom_call.1
$region0: #{tpu_custom_call.1}
  #allocation0 [shape = 'u32[]', space=smem, size = 0x4, offset = 0x4, fixed_abs, tag = 'smem constant byte address 0x4 - core index']
  #allocation1 [shape = 'u32[144,128]{1,0:T(1,128)}', space=vmem, size = 0x12000, scoped, tag = 'internal scratch']
  %s0 = inlined_call_operand.hbm [shape: bf16[64,256], index: 0, kind: input, shape index: {}]
  %s1 = inlined_call_operand.hbm [shape: bf16[256,128], index: 1, kind: input, shape index: {}]
  %s2 = inlined_call_operand.vmem [shape: f32[1,128], index: 2, kind: input, shape index: {}]
  %s3 = inlined_call_operand.hbm [shape: bf16[128,128], index: 3, kind: input, shape index: {}]
  %s4 = inlined_call_operand.vmem [shape: f32[1,128], index: 4, kind: input, shape index: {}]
  %s5 = inlined_call_operand.hbm [shape: bf16[64,128], index: 5, kind: input, shape index: {}]
  %s6 = inlined_call_operand.vmem [shape: f32[1,128], index: 6, kind: input, shape index: {}]
  %s7 = inlined_call_operand.hbm [shape: bf16[128,256], index: 7, kind: input, shape index: {}]
  %s8 = inlined_call_operand.vmem [shape: f32[1,256], index: 8, kind: input, shape index: {}]
  %s9 = inlined_call_operand.hbm [shape: f32[64,64], index: 9, kind: input, shape index: {}]
  %s10 = inlined_call_operand.hbm [shape: f32[64,256], index: 10, kind: output, shape index: {0}]
  %s11 = inlined_call_operand.hbm [shape: f32[64,128], index: 11, kind: output, shape index: {1}]
  %12 = xla_tuple %s10, %s11
  %s13 = sld [smem:[#allocation0]]
  $region105: #{tpu_custom_call.1} parent=0
    _
  %s15 = ssub.s32 1, %s13
  %s16 = scalar_select 0, %s15, %s13
  $region1: #{tpu_custom_call.1} parent=0
    #allocation2 [shape = 'u8[32768]{0}', space=vmem, size = 0x8000, scoped, tag = 'input window, operand 0']
    #allocation3 [shape = 's32[2]{0}', space=sflag, size = 0x8, scoped, tag = 'scoped memory for tpu_custom_call.1']
    #allocation4 [shape = 's32[2]{0}', space=sflag, size = 0x8, scoped, tag = 'scoped memory for tpu_custom_call.1']
    #allocation5 [shape = 'u8[65536]{0}', space=vmem, size = 0x10000, scoped, tag = 'input window, operand 1, single buffered']
    #allocation6 [shape = 's32[1]{0}', space=sflag, size = 0x4, scoped, tag = 'scoped memory for tpu_custom_call.1']
    #allocation7 [shape = 'u8[32768]{0}', space=vmem, size = 0x8000, scoped, tag = 'input window, operand 3, single buffered']
    #allocation8 [shape = 'u8[16384]{0}', space=vmem, size = 0x4000, scoped, tag = 'input window, operand 5, single buffered']
    #allocation9 [shape = 's32[1]{0}', space=sflag, size = 0x4, scoped, tag = 'scoped memory for tpu_custom_call.1']
    #allocation10 [shape = 'u8[65536]{0}', space=vmem, size = 0x10000, scoped, tag = 'input window, operand 7, single buffered']
    #allocation11 [shape = 'u8[32768]{0}', space=vmem, size = 0x8000, scoped, tag = 'input window, operand 9']
    #allocation12 [shape = 's32[2]{0}', space=sflag, size = 0x8, scoped, tag = 'scoped memory for tpu_custom_call.1']
    #allocation13 [shape = 'u8[65536]{0}', space=vmem, size = 0x10000, scoped, tag = 'output window, operand 0']
    #allocation14 [shape = 'u8[32768]{0}', space=vmem, size = 0x8000, scoped, tag = 'output window, operand 1']
    #allocation15 [shape = 's32[2]{0}', space=sflag, size = 0x8, scoped, tag = 'scoped memory for tpu_custom_call.1']
    %17 = vsyncpa [#allocation3], 0
    %s18 = scalar_lea.sflag [#allocation3], 1
    %19 = vsyncpa %s18, 0
    %20 = vsyncpa [#allocation6], 0
    %21 = vsyncpa [#allocation9], 0
    %22 = vsyncpa [#allocation12], 0
    %s23 = scalar_lea.sflag [#allocation12], 1
    %24 = vsyncpa %s23, 0
    %25 = vsyncpa [#allocation4], 0
    %s26 = scalar_lea.sflag [#allocation4], 1
    %27 = vsyncpa %s26, 0
    %28 = vsyncpa [#allocation15], 0
    %s29 = scalar_lea.sflag [#allocation15], 1
    %30 = vsyncpa %s29, 0
    loop: start=0, step=1, limit=4
    $region2: #{tpu_custom_call.1} parent=1 // loop_pre_header
      _
    $region3: #{tpu_custom_call.1} parent=1 // loop_header
      %s32 = sphi 0, %s36
      %p33 = scmp.ge.s32.totalorder %s32, 4
      %s42 = sphi 0, %s44
      %s45 = sphi 0, %s42
      %s46 = sphi 0, %s45
      %s62 = sphi 0, %s46
      %s66 = sphi 0, %s66
      %s68 = sphi 0, %s66
      %s69 = sphi 0, %s68
      %s83 = sphi 0, %s69
      %s87 = sphi 0, %s87
      %s89 = sphi 0, %s87
      %s90 = sphi 0, %s89
      %s104 = sphi 0, %s90
      %s108 = sphi 0, %s108
      %s110 = sphi 0, %s108
      %s111 = sphi 0, %s110
      %s125 = sphi 0, %s111
      %s129 = sphi 0, %s129
      %s131 = sphi 0, %s129
      %s132 = sphi 0, %s131
      %s146 = sphi 0, %s132
      %s150 = sphi 0, %s150
      %s152 = sphi 0, %s150
      %s153 = sphi 0, %s152
      %s167 = sphi 0, %s153
      %s171 = sphi 0, %s171
      %s173 = sphi 0, %s171
      %s174 = sphi 0, %s173
      %s188 = sphi 0, %s174
      %s192 = sphi 0, %s192
      %s194 = sphi 0, %s192
      %s195 = sphi 0, %s194
      %s209 = sphi 0, %s195
      %s213 = sphi 0, %s213
      %s215 = sphi 0, %s213
      %s216 = sphi 0, %s215
      %s230 = sphi 0, %s216
      %s236 = sphi 0, %s238
      %s239 = sphi 0, %s236
      %s240 = sphi 0, %s239
      %s256 = sphi 0, %s240
      %s262 = sphi 0, %s264
      %s265 = sphi 0, %s262
      %s266 = sphi 0, %s265
      %s282 = sphi 0, %s266
      %s288 = sphi 0, %s290
      %s291 = sphi 0, %s288
      %s292 = sphi 0, %s291
      %s308 = sphi 0, %s292
    $region4: #{tpu_custom_call.1} parent=1 // loop_header_branch
      %35 = sbr.rel (%p33) target = $region8
    $region5: #{tpu_custom_call.1} parent=1 // loop_body
      %s37 = ssub.s32 %s32, 1
      %s38 = ssub.s32 %s32, 2
      %s39 = sadd.s32 %s32, 1
      %s40 = ssub.s32 %s32, %s39
      %p41 = scmp.eq.s32.totalorder %s40, 0
      %s43 = sadd.s32 %s42, 1
      %s44 = scalar_select %p41, %s42, %s43
      %p47 = pneg %p41
      %p48 = scmp.eq.s32.totalorder %s32, 1
      %p49 = por %p47, %p48
      %p50 = scmp.ne.s32.totalorder %s42, %s45
      %p51 = scmp.eq.s32.totalorder %s32, 0
      %p52 = por %p50, %p51
      %p53 = scmp.ne.s32.totalorder %s42, %s45
      %p54 = scmp.eq.s32.totalorder %s37, 1
      %p55 = por %p53, %p54
      %p56 = scmp.ne.s32.totalorder %s45, %s46
      %p57 = scmp.eq.s32.totalorder %s37, 0
      %p58 = por %p56, %p57
      %p59 = scmp.ne.s32.totalorder %s45, %s46
      %p60 = scmp.eq.s32.totalorder %s38, 1
      %p61 = por %p59, %p60
      %p63 = scmp.ne.s32.totalorder %s46, %s62
      %p64 = scmp.eq.s32.totalorder %s38, 0
      %p65 = por %p63, %p64
      %s67 = sadd.s32 %s66, 1
      %p70 = scmp.eq.s32.totalorder %s32, 1
      %p71 = scmp.ne.s32.totalorder %s66, %s68
      %p72 = scmp.eq.s32.totalorder %s32, 0
      %p73 = por %p71, %p72
      %p74 = scmp.ne.s32.totalorder %s66, %s68
      %p75 = scmp.eq.s32.totalorder %s37, 1
      %p76 = por %p74, %p75
      %p77 = scmp.ne.s32.totalorder %s68, %s69
      %p78 = scmp.eq.s32.totalorder %s37, 0
      %p79 = por %p77, %p78
      %p80 = scmp.ne.s32.totalorder %s68, %s69
      %p81 = scmp.eq.s32.totalorder %s38, 1
      %p82 = por %p80, %p81
      %p84 = scmp.ne.s32.totalorder %s69, %s83
      %p85 = scmp.eq.s32.totalorder %s38, 0
      %p86 = por %p84, %p85
      %s88 = sadd.s32 %s87, 1
      %p91 = scmp.eq.s32.totalorder %s32, 1
      %p92 = scmp.ne.s32.totalorder %s87, %s89
      %p93 = scmp.eq.s32.totalorder %s32, 0
      %p94 = por %p92, %p93
      %p95 = scmp.ne.s32.totalorder %s87, %s89
      %p96 = scmp.eq.s32.totalorder %s37, 1
      %p97 = por %p95, %p96
      %p98 = scmp.ne.s32.totalorder %s89, %s90
      %p99 = scmp.eq.s32.totalorder %s37, 0
      %p100 = por %p98, %p99
      %p101 = scmp.ne.s32.totalorder %s89, %s90
      %p102 = scmp.eq.s32.totalorder %s38, 1
      %p103 = por %p101, %p102
      %p105 = scmp.ne.s32.totalorder %s90, %s104
      %p106 = scmp.eq.s32.totalorder %s38, 0
      %p107 = por %p105, %p106
      %s109 = sadd.s32 %s108, 1
      %p112 = scmp.eq.s32.totalorder %s32, 1
      %p113 = scmp.ne.s32.totalorder %s108, %s110
      %p114 = scmp.eq.s32.totalorder %s32, 0
      %p115 = por %p113, %p114
      %p116 = scmp.ne.s32.totalorder %s108, %s110
      %p117 = scmp.eq.s32.totalorder %s37, 1
      %p118 = por %p116, %p117
      %p119 = scmp.ne.s32.totalorder %s110, %s111
      %p120 = scmp.eq.s32.totalorder %s37, 0
      %p121 = por %p119, %p120
      %p122 = scmp.ne.s32.totalorder %s110, %s111
      %p123 = scmp.eq.s32.totalorder %s38, 1
      %p124 = por %p122, %p123
      %p126 = scmp.ne.s32.totalorder %s111, %s125
      %p127 = scmp.eq.s32.totalorder %s38, 0
      %p128 = por %p126, %p127
      %s130 = sadd.s32 %s129, 1
      %p133 = scmp.eq.s32.totalorder %s32, 1
      %p134 = scmp.ne.s32.totalorder %s129, %s131
      %p135 = scmp.eq.s32.totalorder %s32, 0
      %p136 = por %p134, %p135
      %p137 = scmp.ne.s32.totalorder %s129, %s131
      %p138 = scmp.eq.s32.totalorder %s37, 1
      %p139 = por %p137, %p138
      %p140 = scmp.ne.s32.totalorder %s131, %s132
      %p141 = scmp.eq.s32.totalorder %s37, 0
      %p142 = por %p140, %p141
      %p143 = scmp.ne.s32.totalorder %s131, %s132
      %p144 = scmp.eq.s32.totalorder %s38, 1
      %p145 = por %p143, %p144
      %p147 = scmp.ne.s32.totalorder %s132, %s146
      %p148 = scmp.eq.s32.totalorder %s38, 0
      %p149 = por %p147, %p148
      %s151 = sadd.s32 %s150, 1
      %p154 = scmp.eq.s32.totalorder %s32, 1
      %p155 = scmp.ne.s32.totalorder %s150, %s152
      %p156 = scmp.eq.s32.totalorder %s32, 0
      %p157 = por %p155, %p156
      %p158 = scmp.ne.s32.totalorder %s150, %s152
      %p159 = scmp.eq.s32.totalorder %s37, 1
      %p160 = por %p158, %p159
      %p161 = scmp.ne.s32.totalorder %s152, %s153
      %p162 = scmp.eq.s32.totalorder %s37, 0
      %p163 = por %p161, %p162
      %p164 = scmp.ne.s32.totalorder %s152, %s153
      %p165 = scmp.eq.s32.totalorder %s38, 1
      %p166 = por %p164, %p165
      %p168 = scmp.ne.s32.totalorder %s153, %s167
      %p169 = scmp.eq.s32.totalorder %s38, 0
      %p170 = por %p168, %p169
      %s172 = sadd.s32 %s171, 1
      %p175 = scmp.eq.s32.totalorder %s32, 1
      %p176 = scmp.ne.s32.totalorder %s171, %s173
      %p177 = scmp.eq.s32.totalorder %s32, 0
      %p178 = por %p176, %p177
      %p179 = scmp.ne.s32.totalorder %s171, %s173
      %p180 = scmp.eq.s32.totalorder %s37, 1
      %p181 = por %p179, %p180
      %p182 = scmp.ne.s32.totalorder %s173, %s174
      %p183 = scmp.eq.s32.totalorder %s37, 0
      %p184 = por %p182, %p183
      %p185 = scmp.ne.s32.totalorder %s173, %s174
      %p186 = scmp.eq.s32.totalorder %s38, 1
      %p187 = por %p185, %p186
      %p189 = scmp.ne.s32.totalorder %s174, %s188
      %p190 = scmp.eq.s32.totalorder %s38, 0
      %p191 = por %p189, %p190
      %s193 = sadd.s32 %s192, 1
      %p196 = scmp.eq.s32.totalorder %s32, 1
      %p197 = scmp.ne.s32.totalorder %s192, %s194
      %p198 = scmp.eq.s32.totalorder %s32, 0
      %p199 = por %p197, %p198
      %p200 = scmp.ne.s32.totalorder %s192, %s194
      %p201 = scmp.eq.s32.totalorder %s37, 1
      %p202 = por %p200, %p201
      %p203 = scmp.ne.s32.totalorder %s194, %s195
      %p204 = scmp.eq.s32.totalorder %s37, 0
      %p205 = por %p203, %p204
      %p206 = scmp.ne.s32.totalorder %s194, %s195
      %p207 = scmp.eq.s32.totalorder %s38, 1
      %p208 = por %p206, %p207
      %p210 = scmp.ne.s32.totalorder %s195, %s209
      %p211 = scmp.eq.s32.totalorder %s38, 0
      %p212 = por %p210, %p211
      %s214 = sadd.s32 %s213, 1
      %p217 = scmp.eq.s32.totalorder %s32, 1
      %p218 = scmp.ne.s32.totalorder %s213, %s215
      %p219 = scmp.eq.s32.totalorder %s32, 0
      %p220 = por %p218, %p219
      %p221 = scmp.ne.s32.totalorder %s213, %s215
      %p222 = scmp.eq.s32.totalorder %s37, 1
      %p223 = por %p221, %p222
      %p224 = scmp.ne.s32.totalorder %s215, %s216
      %p225 = scmp.eq.s32.totalorder %s37, 0
      %p226 = por %p224, %p225
      %p227 = scmp.ne.s32.totalorder %s215, %s216
      %p228 = scmp.eq.s32.totalorder %s38, 1
      %p229 = por %p227, %p228
      %p231 = scmp.ne.s32.totalorder %s216, %s230
      %p232 = scmp.eq.s32.totalorder %s38, 0
      %p233 = por %p231, %p232
      %s234 = ssub.s32 %s32, %s39
      %p235 = scmp.eq.s32.totalorder %s234, 0
      %s237 = sadd.s32 %s236, 1
      %s238 = scalar_select %p235, %s236, %s237
      %p241 = pneg %p235
      %p242 = scmp.eq.s32.totalorder %s32, 1
      %p243 = por %p241, %p242
      %p244 = scmp.ne.s32.totalorder %s236, %s239
      %p245 = scmp.eq.s32.totalorder %s32, 0
      %p246 = por %p244, %p245
      %p247 = scmp.ne.s32.totalorder %s236, %s239
      %p248 = scmp.eq.s32.totalorder %s37, 1
      %p249 = por %p247, %p248
      %p250 = scmp.ne.s32.totalorder %s239, %s240
      %p251 = scmp.eq.s32.totalorder %s37, 0
      %p252 = por %p250, %p251
      %p253 = scmp.ne.s32.totalorder %s239, %s240
      %p254 = scmp.eq.s32.totalorder %s38, 1
      %p255 = por %p253, %p254
      %p257 = scmp.ne.s32.totalorder %s240, %s256
      %p258 = scmp.eq.s32.totalorder %s38, 0
      %p259 = por %p257, %p258
      %s260 = ssub.s32 %s32, %s39
      %p261 = scmp.eq.s32.totalorder %s260, 0
      %s263 = sadd.s32 %s262, 1
      %s264 = scalar_select %p261, %s262, %s263
      %p267 = pneg %p261
      %p268 = scmp.eq.s32.totalorder %s32, 1
      %p269 = por %p267, %p268
      %p270 = scmp.ne.s32.totalorder %s262, %s265
      %p271 = scmp.eq.s32.totalorder %s32, 0
      %p272 = por %p270, %p271
      %p273 = scmp.ne.s32.totalorder %s262, %s265
      %p274 = scmp.eq.s32.totalorder %s37, 1
      %p275 = por %p273, %p274
      %p276 = scmp.ne.s32.totalorder %s265, %s266
      %p277 = scmp.eq.s32.totalorder %s37, 0
      %p278 = por %p276, %p277
      %p279 = scmp.ne.s32.totalorder %s265, %s266
      %p280 = scmp.eq.s32.totalorder %s38, 1
      %p281 = por %p279, %p280
      %p283 = scmp.ne.s32.totalorder %s266, %s282
      %p284 = scmp.eq.s32.totalorder %s38, 0
      %p285 = por %p283, %p284
      %s286 = ssub.s32 %s32, %s39
      %p287 = scmp.eq.s32.totalorder %s286, 0
      %s289 = sadd.s32 %s288, 1
      %s290 = scalar_select %p287, %s288, %s289
      %p293 = pneg %p287
      %p294 = scmp.eq.s32.totalorder %s32, 1
      %p295 = por %p293, %p294
      %p296 = scmp.ne.s32.totalorder %s288, %s291
      %p297 = scmp.eq.s32.totalorder %s32, 0
      %p298 = por %p296, %p297
      %p299 = scmp.ne.s32.totalorder %s288, %s291
      %p300 = scmp.eq.s32.totalorder %s37, 1
      %p301 = por %p299, %p300
      %p302 = scmp.ne.s32.totalorder %s291, %s292
      %p303 = scmp.eq.s32.totalorder %s37, 0
      %p304 = por %p302, %p303
      %p305 = scmp.ne.s32.totalorder %s291, %s292
      %p306 = scmp.eq.s32.totalorder %s38, 1
      %p307 = por %p305, %p306
      %p309 = scmp.ne.s32.totalorder %s292, %s308
      %p310 = scmp.eq.s32.totalorder %s38, 0
      %p311 = por %p309, %p310
      %p312 = scmp.le.s32.totalorder 1, %s32
      %p313 = scmp.lt.s32.totalorder %s32, 3
      %p314 = pnand %p312, %p313
      %p315 = pneg %p314
      // Predicated region
      $region9: #{tpu_custom_call.1} parent=5 // pred_check
        _
      $region10: #{tpu_custom_call.1} parent=5 // pred_check_branch
        %317 = sbr.rel (%p314) target = $region12
      $region11: #{tpu_custom_call.1} parent=5 // pred_region
        %s318 = ssub.s32 %s32, 1
        // Predicated region
        $region13: #{tpu_custom_call.1} parent=11 // pred_check
          %p319 = pneg %p79
        $region14: #{tpu_custom_call.1} parent=11 // pred_check_branch
          %321 = sbr.rel (%p319) target = $region16
        $region15: #{tpu_custom_call.1} parent=11 // pred_region
          %s323 = ssub.s32 2048, 2048
          %324 = vsyncadd [#allocation6], %s323
          %s325 = sshll.u32 [#allocation5], 4
          %s326 = int_to_ptr.vmem [resolvable:$true] %s325
          %331 = dma.hbm_to_vmem [thread:$0]  %s1, 2048, %s326, [#allocation6], 64, 64, 4
        $region16: #{tpu_custom_call.1} parent=11 // pred_fallthru
          _
        // Predicated region
        $region17: #{tpu_custom_call.1} parent=11 // pred_check
          %p332 = pneg %p100
        $region18: #{tpu_custom_call.1} parent=11 // pred_check_branch
          %334 = sbr.rel (%p332) target = $region20
        $region19: #{tpu_custom_call.1} parent=11 // pred_region
          _
        $region20: #{tpu_custom_call.1} parent=11 // pred_fallthru
          _
        // Predicated region
        $region21: #{tpu_custom_call.1} parent=11 // pred_check
          %p335 = pneg %p121
        $region22: #{tpu_custom_call.1} parent=11 // pred_check_branch
          %337 = sbr.rel (%p335) target = $region24
        $region23: #{tpu_custom_call.1} parent=11 // pred_region
          %s339 = ssub.s32 1024, 1024
          %340 = vsyncadd [#allocation6], %s339
          %s341 = sshll.u32 [#allocation7], 4
          %s342 = int_to_ptr.vmem [resolvable:$true] %s341
          %347 = dma.hbm_to_vmem [thread:$0]  %s3, 1024, %s342, [#allocation6], 64, 64, 4
        $region24: #{tpu_custom_call.1} parent=11 // pred_fallthru
          _
        // Predicated region
        $region25: #{tpu_custom_call.1} parent=11 // pred_check
          %p348 = pneg %p142
        $region26: #{tpu_custom_call.1} parent=11 // pred_check_branch
          %350 = sbr.rel (%p348) target = $region28
        $region27: #{tpu_custom_call.1} parent=11 // pred_region
          _
        $region28: #{tpu_custom_call.1} parent=11 // pred_fallthru
          _
        // Predicated region
        $region29: #{tpu_custom_call.1} parent=11 // pred_check
          %p351 = pneg %p163
        $region30: #{tpu_custom_call.1} parent=11 // pred_check_branch
          %353 = sbr.rel (%p351) target = $region32
        $region31: #{tpu_custom_call.1} parent=11 // pred_region
          %s355 = ssub.s32 512, 512
          %356 = vsyncadd [#allocation9], %s355
          %s357 = sshll.u32 [#allocation8], 4
          %s358 = int_to_ptr.vmem [resolvable:$true] %s357
          %363 = dma.hbm_to_vmem [thread:$0]  %s5, 512, %s358, [#allocation9], 64, 64, 4
        $region32: #{tpu_custom_call.1} parent=11 // pred_fallthru
          _
        // Predicated region
        $region33: #{tpu_custom_call.1} parent=11 // pred_check
          %p364 = pneg %p184
        $region34: #{tpu_custom_call.1} parent=11 // pred_check_branch
          %366 = sbr.rel (%p364) target = $region36
        $region35: #{tpu_custom_call.1} parent=11 // pred_region
          _
        $region36: #{tpu_custom_call.1} parent=11 // pred_fallthru
          _
        // Predicated region
        $region37: #{tpu_custom_call.1} parent=11 // pred_check
          %p367 = pneg %p205
        $region38: #{tpu_custom_call.1} parent=11 // pred_check_branch
          %369 = sbr.rel (%p367) target = $region40
        $region39: #{tpu_custom_call.1} parent=11 // pred_region
          %s371 = ssub.s32 2048, 2048
          %372 = vsyncadd [#allocation9], %s371
          %s373 = sshll.u32 [#allocation10], 4
          %s374 = int_to_ptr.vmem [resolvable:$true] %s373
          %379 = dma.hbm_to_vmem [thread:$0]  %s7, 2048, %s374, [#allocation9], 128, 128, 8
        $region40: #{tpu_custom_call.1} parent=11 // pred_fallthru
          _
        // Predicated region
        $region41: #{tpu_custom_call.1} parent=11 // pred_check
          %p380 = pneg %p226
        $region42: #{tpu_custom_call.1} parent=11 // pred_check_branch
          %382 = sbr.rel (%p380) target = $region44
        $region43: #{tpu_custom_call.1} parent=11 // pred_region
          _
        $region44: #{tpu_custom_call.1} parent=11 // pred_fallthru
          _
      $region12: #{tpu_custom_call.1} parent=5 // pred_fallthru
        _
      %p383 = scmp.lt.s32.totalorder %s32, 2
      // Predicated region
      $region45: #{tpu_custom_call.1} parent=5 // pred_check
        %p384 = pneg %p383
      $region46: #{tpu_custom_call.1} parent=5 // pred_check_branch
        %386 = sbr.rel (%p384) target = $region48
      $region47: #{tpu_custom_call.1} parent=5 // pred_region
        // Predicated region
        $region49: #{tpu_custom_call.1} parent=47 // pred_check
          %p387 = pneg %p52
        $region50: #{tpu_custom_call.1} parent=47 // pred_check_branch
          %389 = sbr.rel (%p387) target = $region52
        $region51: #{tpu_custom_call.1} parent=47 // pred_region
          %s390 = sand.u32 %s42, 1
          %s391 = scalar_lea.sflag [#allocation3], %s390
          %s392 = sand.u32 %s42, 1
          %s393 = smul.addr %s392, 32
          %s394 = scalar_lea.vmem [#allocation2], %s393
          %s395 = smul.u32 4, %s32
          %s397 = ssub.s32 512, 512
          %398 = vsyncadd %s391, %s397
          %s399 = smul.addr %s395, 2
          %s400 = smul.addr %s399, 64
          %s401 = scalar_lea.hbm %s0, %s400
          %s402 = sshll.u32 %s394, 4
          %s403 = int_to_ptr.vmem [resolvable:$true] %s402
          %408 = dma.hbm_to_vmem [thread:$0]  %s401, 512, %s403, %s391, 128, 128, 8
        $region52: #{tpu_custom_call.1} parent=47 // pred_fallthru
          _
        // Predicated region
        $region53: #{tpu_custom_call.1} parent=47 // pred_check
          %p409 = pneg %p246
        $region54: #{tpu_custom_call.1} parent=47 // pred_check_branch
          %411 = sbr.rel (%p409) target = $region56
        $region55: #{tpu_custom_call.1} parent=47 // pred_region
          %s412 = sand.u32 %s236, 1
          %s413 = scalar_lea.sflag [#allocation12], %s412
          %s414 = sand.u32 %s236, 1
          %s415 = smul.addr %s414, 32
          %s416 = scalar_lea.vmem [#allocation11], %s415
          %s417 = smul.u32 4, %s32
          %s419 = ssub.s32 512, 512
          %420 = vsyncadd %s413, %s419
          %s421 = smul.addr %s417, 128
          %s422 = scalar_lea.hbm %s9, %s421
          %s423 = sshll.u32 %s416, 4
          %s424 = int_to_ptr.vmem [resolvable:$true] %s423
          %429 = dma.hbm_to_vmem [thread:$0]  %s422, 512, %s424, %s413, 128, 128, 8
        $region56: #{tpu_custom_call.1} parent=47 // pred_fallthru
          _
      $region48: #{tpu_custom_call.1} parent=5 // pred_fallthru
        _
      %p430 = scmp.le.s32.totalorder 1, %s32
      %p431 = scmp.lt.s32.totalorder %s32, 3
      %p432 = pnand %p430, %p431
      %p433 = pneg %p432
      // Predicated region
      $region57: #{tpu_custom_call.1} parent=5 // pred_check
        _
      $region58: #{tpu_custom_call.1} parent=5 // pred_check_branch
        %435 = sbr.rel (%p432) target = $region60
      $region59: #{tpu_custom_call.1} parent=5 // pred_region
        %s436 = ssub.s32 %s32, 1
        %s437 = sand.u32 %s45, 1
        %s438 = scalar_lea.sflag [#allocation3], %s437
        %s439 = sand.u32 %s45, 1
        %s440 = smul.addr %s439, 32
        %s441 = scalar_lea.vmem [#allocation2], %s440
        // Predicated region
        $region61: #{tpu_custom_call.1} parent=59 // pred_check
          %p442 = pneg %p58
        $region62: #{tpu_custom_call.1} parent=59 // pred_check_branch
          %444 = sbr.rel (%p442) target = $region64
        $region63: #{tpu_custom_call.1} parent=59 // pred_region
          %445 = dma.done %s438, 512
        $region64: #{tpu_custom_call.1} parent=59 // pred_fallthru
          _
        // Predicated region
        $region65: #{tpu_custom_call.1} parent=59 // pred_check
          %p446 = pneg %p79
        $region66: #{tpu_custom_call.1} parent=59 // pred_check_branch
          %448 = sbr.rel (%p446) target = $region68
        $region67: #{tpu_custom_call.1} parent=59 // pred_region
          %449 = dma.done [#allocation6], 2048
        $region68: #{tpu_custom_call.1} parent=59 // pred_fallthru
          _
        // Predicated region
        $region69: #{tpu_custom_call.1} parent=59 // pred_check
          %p450 = pneg %p121
        $region70: #{tpu_custom_call.1} parent=59 // pred_check_branch
          %452 = sbr.rel (%p450) target = $region72
        $region71: #{tpu_custom_call.1} parent=59 // pred_region
          %453 = dma.done [#allocation6], 1024
        $region72: #{tpu_custom_call.1} parent=59 // pred_fallthru
          _
        // Predicated region
        $region73: #{tpu_custom_call.1} parent=59 // pred_check
          %p454 = pneg %p163
        $region74: #{tpu_custom_call.1} parent=59 // pred_check_branch
          %456 = sbr.rel (%p454) target = $region76
        $region75: #{tpu_custom_call.1} parent=59 // pred_region
          %457 = dma.done [#allocation9], 512
        $region76: #{tpu_custom_call.1} parent=59 // pred_fallthru
          _
        // Predicated region
        $region77: #{tpu_custom_call.1} parent=59 // pred_check
          %p458 = pneg %p205
        $region78: #{tpu_custom_call.1} parent=59 // pred_check_branch
          %460 = sbr.rel (%p458) target = $region80
        $region79: #{tpu_custom_call.1} parent=59 // pred_region
          %461 = dma.done [#allocation9], 2048
        $region80: #{tpu_custom_call.1} parent=59 // pred_fallthru
          _
        %s462 = sand.u32 %s239, 1
        %s463 = scalar_lea.sflag [#allocation12], %s462
        %s464 = sand.u32 %s239, 1
        %s465 = smul.addr %s464, 32
        %s466 = scalar_lea.vmem [#allocation11], %s465
        // Predicated region
        $region81: #{tpu_custom_call.1} parent=59 // pred_check
          %p467 = pneg %p252
        $region82: #{tpu_custom_call.1} parent=59 // pred_check_branch
          %469 = sbr.rel (%p467) target = $region84
        $region83: #{tpu_custom_call.1} parent=59 // pred_region
          %470 = dma.done %s463, 512
        $region84: #{tpu_custom_call.1} parent=59 // pred_fallthru
          _
        %s471 = sand.u32 %s45, 1
        %s472 = scalar_lea.sflag [#allocation3], %s471
        %s473 = sand.u32 %s45, 1
        %s474 = smul.addr %s473, 32
        %s475 = scalar_lea.vmem [#allocation2], %s474
        %p476 = pneg %p58
        %p477 = pneg %p55
        %p478 = pneg %p79
        %p479 = pneg %p76
        %p480 = pneg %p100
        %p481 = pneg %p97
        %p482 = pneg %p121
        %p483 = pneg %p118
        %p484 = pneg %p142
        %p485 = pneg %p139
        %p486 = pneg %p163
        %p487 = pneg %p160
        %p488 = pneg %p184
        %p489 = pneg %p181
        %p490 = pneg %p205
        %p491 = pneg %p202
        %p492 = pneg %p226
        %p493 = pneg %p223
        %s494 = sand.u32 %s239, 1
        %s495 = scalar_lea.sflag [#allocation12], %s494
        %s496 = sand.u32 %s239, 1
        %s497 = smul.addr %s496, 32
        %s498 = scalar_lea.vmem [#allocation11], %s497
        %p499 = pneg %p252
        %p500 = pneg %p249
        %p501 = pneg %p278
        %p502 = pneg %p275
        %s503 = sand.u32 %s265, 1
        %s504 = scalar_lea.sflag [#allocation4], %s503
        %s505 = sand.u32 %s265, 1
        %s506 = smul.addr %s505, 64
        %s507 = scalar_lea.vmem [#allocation13], %s506
        %p508 = pneg %p304
        %p509 = pneg %p301
        %s510 = sand.u32 %s291, 1
        %s511 = scalar_lea.sflag [#allocation15], %s510
        %s512 = sand.u32 %s291, 1
        %s513 = smul.addr %s512, 32
        %s514 = scalar_lea.vmem [#allocation14], %s513
        %s515 = smul.u32 4, %s37
        %s516 = smul.u32 4, %s37
        %s517 = smul.u32 4, %s37
        %s518 = smul.u32 4, %s37
        %v520 = vld [vmem:[%s441] sm:$0xff]
        %v521 = vld [vmem:[%s441 + $0x8] sm:$0xff]
        %v522 = vld [vmem:[%s441 + $0x10] sm:$0xff]
        %v523 = vld [vmem:[%s441 + $0x18] sm:$0xff]
        %v524 = vld [vmem:[#allocation5] sm:$0xf]
        %v525 = vld [vmem:[#allocation5 + $0x4] sm:$0xf]
        %v526 = vld [vmem:[#allocation5 + $0x8] sm:$0xf]
        %v527 = vld [vmem:[#allocation5 + $0xc] sm:$0xf]
        %v528 = vld [vmem:[#allocation5 + $0x10] sm:$0xf]
        %v529 = vld [vmem:[#allocation5 + $0x14] sm:$0xf]
        %v530 = vld [vmem:[#allocation5 + $0x18] sm:$0xf]
        %v531 = vld [vmem:[#allocation5 + $0x1c] sm:$0xf]
        %v532 = vld [vmem:[#allocation5 + $0x20] sm:$0xf]
        %v533 = vld [vmem:[#allocation5 + $0x24] sm:$0xf]
        %v534 = vld [vmem:[#allocation5 + $0x28] sm:$0xf]
        %v535 = vld [vmem:[#allocation5 + $0x2c] sm:$0xf]
        %v536 = vld [vmem:[#allocation5 + $0x30] sm:$0xf]
        %v537 = vld [vmem:[#allocation5 + $0x34] sm:$0xf]
        %v538 = vld [vmem:[#allocation5 + $0x38] sm:$0xf]
        %v539 = vld [vmem:[#allocation5 + $0x3c] sm:$0xf]
        %v540 = vld [vmem:[#allocation5 + $0x40] sm:$0xf]
        %v541 = vld [vmem:[#allocation5 + $0x44] sm:$0xf]
        %v542 = vld [vmem:[#allocation5 + $0x48] sm:$0xf]
        %v543 = vld [vmem:[#allocation5 + $0x4c] sm:$0xf]
        %v544 = vld [vmem:[#allocation5 + $0x50] sm:$0xf]
        %v545 = vld [vmem:[#allocation5 + $0x54] sm:$0xf]
        %v546 = vld [vmem:[#allocation5 + $0x58] sm:$0xf]
        %v547 = vld [vmem:[#allocation5 + $0x5c] sm:$0xf]
        %v548 = vld [vmem:[#allocation5 + $0x60] sm:$0xf]
        %v549 = vld [vmem:[#allocation5 + $0x64] sm:$0xf]
        %v550 = vld [vmem:[#allocation5 + $0x68] sm:$0xf]
        %v551 = vld [vmem:[#allocation5 + $0x6c] sm:$0xf]
        %v552 = vld [vmem:[#allocation5 + $0x70] sm:$0xf]
        %v553 = vld [vmem:[#allocation5 + $0x74] sm:$0xf]
        %v554 = vld [vmem:[#allocation5 + $0x78] sm:$0xf]
        %v555 = vld [vmem:[#allocation5 + $0x7c] sm:$0xf]
        %v556 = vld [vmem:[%s2] sm:$0x1]
        %v558 = vlaneseq
        %v559 = vshrl.u32 %v558, 7
        %v560 = vsub.s32 0, %v559
        %v561 = vrot.slane %v556, %v560
        %v567 = vunpack.c.l.b16 %v520
        %v568 = vunpack.c.h.b16 %v520
        %v569 = vunpack.c.l.b16 %v521
        %v570 = vunpack.c.h.b16 %v521
        %v571 = vunpack.c.l.b16 %v522
        %v572 = vunpack.c.h.b16 %v522
        %v573 = vunpack.c.l.b16 %v523
        %v574 = vunpack.c.h.b16 %v523
        %v575 = vpack.c.b16 %v569, %v567
        %v576 = vpack.c.b16 %v570, %v568
        %v577 = vpack.c.b16 %v573, %v571
        %v578 = vpack.c.b16 %v574, %v572
        %v615 = vunpack.c.l.b16 %v524
        %v616 = vunpack.c.l.b16 %v525
        %v617 = vunpack.c.l.b16 %v526
        %v618 = vunpack.c.l.b16 %v527
        %v619 = vunpack.c.l.b16 %v528
        %v620 = vunpack.c.l.b16 %v529
        %v621 = vunpack.c.l.b16 %v530
        %v622 = vunpack.c.l.b16 %v531
        %v623 = vunpack.c.l.b16 %v532
        %v624 = vunpack.c.l.b16 %v533
        %v625 = vunpack.c.l.b16 %v534
        %v626 = vunpack.c.l.b16 %v535
        %v627 = vunpack.c.l.b16 %v536
        %v628 = vunpack.c.l.b16 %v537
        %v629 = vunpack.c.l.b16 %v538
        %v630 = vunpack.c.l.b16 %v539
        %v631 = vunpack.c.l.b16 %v540
        %v632 = vunpack.c.l.b16 %v541
        %v633 = vunpack.c.l.b16 %v542
        %v634 = vunpack.c.l.b16 %v543
        %v635 = vunpack.c.l.b16 %v544
        %v636 = vunpack.c.l.b16 %v545
        %v637 = vunpack.c.l.b16 %v546
        %v638 = vunpack.c.l.b16 %v547
        %v639 = vunpack.c.l.b16 %v548
        %v640 = vunpack.c.l.b16 %v549
        %v641 = vunpack.c.l.b16 %v550
        %v642 = vunpack.c.l.b16 %v551
        %v643 = vunpack.c.l.b16 %v552
        %v644 = vunpack.c.l.b16 %v553
        %v645 = vunpack.c.l.b16 %v554
        %v646 = vunpack.c.l.b16 %v555
        %v647 = vpack.c.b16 %v616, %v615
        %v648 = vpack.c.b16 %v618, %v617
        %v649 = vpack.c.b16 %v620, %v619
        %v650 = vpack.c.b16 %v622, %v621
        %v651 = vpack.c.b16 %v624, %v623
        %v652 = vpack.c.b16 %v626, %v625
        %v653 = vpack.c.b16 %v628, %v627
        %v654 = vpack.c.b16 %v630, %v629
        %v655 = vpack.c.b16 %v632, %v631
        %v656 = vpack.c.b16 %v634, %v633
        %v657 = vpack.c.b16 %v636, %v635
        %v658 = vpack.c.b16 %v638, %v637
        %v659 = vpack.c.b16 %v640, %v639
        %v660 = vpack.c.b16 %v642, %v641
        %v661 = vpack.c.b16 %v644, %v643
        %v662 = vpack.c.b16 %v646, %v645
        %679 = vmatprep.subr.bf16.mxu0 0
        %680 = vmatpush1.bf16.msra.mxu0 %v647
        %681 = vmatprep.subr.bf16.mxu0 0
        %682 = vmatpush1.bf16.msra.mxu0 %v648
        %683 = vmatprep.subr.bf16.mxu0 0
        %684 = vmatpush1.bf16.msra.mxu0 %v649
        %685 = vmatprep.subr.bf16.mxu0 0
        %686 = vmatpush1.bf16.msra.mxu0 %v650
        %687 = vmatprep.subr.bf16.mxu0 0
        %688 = vmatpush1.bf16.msra.mxu0 %v651
        %689 = vmatprep.subr.bf16.mxu0 0
        %690 = vmatpush1.bf16.msra.mxu0 %v652
        %691 = vmatprep.subr.bf16.mxu0 0
        %692 = vmatpush1.bf16.msra.mxu0 %v653
        %693 = vmatprep.subr.bf16.mxu0 0
        %694 = vmatpush1.bf16.msra.mxu0 %v654
        %695 = vmatprep.subr.bf16.mxu0 0
        %696 = vmatpush1.bf16.msra.mxu0 %v655
        %697 = vmatprep.subr.bf16.mxu0 0
        %698 = vmatpush1.bf16.msra.mxu0 %v656
        %699 = vmatprep.subr.bf16.mxu0 0
        %700 = vmatpush1.bf16.msra.mxu0 %v657
        %701 = vmatprep.subr.bf16.mxu0 0
        %702 = vmatpush1.bf16.msra.mxu0 %v658
        %703 = vmatprep.subr.bf16.mxu0 0
        %704 = vmatpush1.bf16.msra.mxu0 %v659
        %705 = vmatprep.subr.bf16.mxu0 0
        %706 = vmatpush1.bf16.msra.mxu0 %v660
        %707 = vmatprep.subr.bf16.mxu0 0
        %708 = vmatpush1.bf16.msra.mxu0 %v661
        %709 = vmatprep.subr.bf16.mxu0 0
        %710 = vmatpush1.bf16.msra.mxu0 %v662
        %711 = vmatprep.mubr.bf16.mxu0 %v576
        %712 = vmatmul.mubr.bf16.gmra.mrb[0].mxu0 %v575
        %v713 = vpop.f32.mrb[0].mxu0
        %v714 = vadd.f32 %v561, %v713
        %v715 = vpop.f32.mrb[0].mxu0
        %v716 = vpop.f32.mrb[0].mxu0
        %v717 = vadd.f32 %v561, %v716
        %v718 = vpop.f32.mrb[0].mxu0
        %719 = vmatprep.mubr.bf16.mxu0 %v578
        %720 = vmatmul.mubr.bf16.gmra.mrb[0].mxu0 %v577
        %v721 = vpop.f32.mrb[0].mxu0
        %v722 = vadd.f32 %v561, %v721
        %v723 = vpop.f32.mrb[0].mxu0
        %v724 = vpop.f32.mrb[0].mxu0
        %v725 = vadd.f32 %v561, %v724
        %v726 = vpop.f32.mrb[0].mxu0
        %727 = vdwg.mxu0
        %v728 = vmax.f32 %v714, 0.0
        %v729 = vmax.f32 %v717, 0.0
        %v730 = vmax.f32 %v722, 0.0
        %v731 = vmax.f32 %v725, 0.0
        %v732 = vpack.c.bf16 %v729, %v728
        %v733 = vpack.c.bf16 %v731, %v730
        %v734 = vld [vmem:[#allocation7] sm:$0xf]
        %v735 = vld [vmem:[#allocation7 + $0x4] sm:$0xf]
        %v736 = vld [vmem:[#allocation7 + $0x8] sm:$0xf]
        %v737 = vld [vmem:[#allocation7 + $0xc] sm:$0xf]
        %v738 = vld [vmem:[#allocation7 + $0x10] sm:$0xf]
        %v739 = vld [vmem:[#allocation7 + $0x14] sm:$0xf]
        %v740 = vld [vmem:[#allocation7 + $0x18] sm:$0xf]
        %v741 = vld [vmem:[#allocation7 + $0x1c] sm:$0xf]
        %v742 = vld [vmem:[#allocation7 + $0x20] sm:$0xf]
        %v743 = vld [vmem:[#allocation7 + $0x24] sm:$0xf]
        %v744 = vld [vmem:[#allocation7 + $0x28] sm:$0xf]
        %v745 = vld [vmem:[#allocation7 + $0x2c] sm:$0xf]
        %v746 = vld [vmem:[#allocation7 + $0x30] sm:$0xf]
        %v747 = vld [vmem:[#allocation7 + $0x34] sm:$0xf]
        %v748 = vld [vmem:[#allocation7 + $0x38] sm:$0xf]
        %v749 = vld [vmem:[#allocation7 + $0x3c] sm:$0xf]
        %v750 = vld [vmem:[%s4] sm:$0x1]
        %v752 = vlaneseq
        %v753 = vshrl.u32 %v752, 7
        %v754 = vsub.s32 0, %v753
        %v755 = vrot.slane %v750, %v754
        %v773 = vunpack.c.l.b16 %v734
        %v774 = vunpack.c.l.b16 %v735
        %v775 = vunpack.c.l.b16 %v736
        %v776 = vunpack.c.l.b16 %v737
        %v777 = vunpack.c.l.b16 %v738
        %v778 = vunpack.c.l.b16 %v739
        %v779 = vunpack.c.l.b16 %v740
        %v780 = vunpack.c.l.b16 %v741
        %v781 = vunpack.c.l.b16 %v742
        %v782 = vunpack.c.l.b16 %v743
        %v783 = vunpack.c.l.b16 %v744
        %v784 = vunpack.c.l.b16 %v745
        %v785 = vunpack.c.l.b16 %v746
        %v786 = vunpack.c.l.b16 %v747
        %v787 = vunpack.c.l.b16 %v748
        %v788 = vunpack.c.l.b16 %v749
        %v789 = vpack.c.b16 %v774, %v773
        %v790 = vpack.c.b16 %v776, %v775
        %v791 = vpack.c.b16 %v778, %v777
        %v792 = vpack.c.b16 %v780, %v779
        %v793 = vpack.c.b16 %v782, %v781
        %v794 = vpack.c.b16 %v784, %v783
        %v795 = vpack.c.b16 %v786, %v785
        %v796 = vpack.c.b16 %v788, %v787
        %805 = vmatprep.subr.bf16.mxu0 0
        %806 = vmatpush1.bf16.msra.mxu0 %v789
        %807 = vmatprep.subr.bf16.mxu0 0
        %808 = vmatpush1.bf16.msra.mxu0 %v790
        %809 = vmatprep.subr.bf16.mxu0 0
        %810 = vmatpush1.bf16.msra.mxu0 %v791
        %811 = vmatprep.subr.bf16.mxu0 0
        %812 = vmatpush1.bf16.msra.mxu0 %v792
        %813 = vmatprep.subr.bf16.mxu0 0
        %814 = vmatpush1.bf16.msra.mxu0 %v793
        %815 = vmatprep.subr.bf16.mxu0 0
        %816 = vmatpush1.bf16.msra.mxu0 %v794
        %817 = vmatprep.subr.bf16.mxu0 0
        %818 = vmatpush1.bf16.msra.mxu0 %v795
        %819 = vmatprep.subr.bf16.mxu0 0
        %820 = vmatpush1.bf16.msra.mxu0 %v796
        %821 = vmatprep.subr.bf16.mxu0 0
        %822 = vmatpush1.bf16.msra.mxu0 0
        %823 = vmatprep.subr.bf16.mxu0 0
        %824 = vmatpush1.bf16.msra.mxu0 0
        %825 = vmatprep.subr.bf16.mxu0 0
        %826 = vmatpush1.bf16.msra.mxu0 0
        %827 = vmatprep.subr.bf16.mxu0 0
        %828 = vmatpush1.bf16.msra.mxu0 0
        %829 = vmatprep.subr.bf16.mxu0 0
        %830 = vmatpush1.bf16.msra.mxu0 0
        %831 = vmatprep.subr.bf16.mxu0 0
        %832 = vmatpush1.bf16.msra.mxu0 0
        %833 = vmatprep.subr.bf16.mxu0 0
        %834 = vmatpush1.bf16.msra.mxu0 0
        %835 = vmatprep.subr.bf16.mxu0 0
        %836 = vmatpush1.bf16.msra.mxu0 0
        %837 = vmatprep.mubr.bf16.mxu0 0
        %838 = vmatmul.mubr.bf16.gmra.mrb[0].mxu0 %v732
        %v839 = vpop.f32.mrb[0].mxu0
        %v840 = vadd.f32 %v755, %v839
        %v841 = vpop.f32.mrb[0].mxu0
        %v842 = vpop.f32.mrb[0].mxu0
        %v843 = vadd.f32 %v755, %v842
        %v844 = vpop.f32.mrb[0].mxu0
        %845 = vmatprep.mubr.bf16.mxu0 0
        %846 = vmatmul.mubr.bf16.gmra.mrb[0].mxu0 %v733
        %v847 = vpop.f32.mrb[0].mxu0
        %v848 = vadd.f32 %v755, %v847
        %v849 = vpop.f32.mrb[0].mxu0
        %v850 = vpop.f32.mrb[0].mxu0
        %v851 = vadd.f32 %v755, %v850
        %v852 = vpop.f32.mrb[0].mxu0
        %853 = vdwg.mxu0
        %v854 = vmul.f32 %v840, 0.5
        %v855 = vmul.f32 %v843, 0.5
        %v856 = vmul.f32 %v848, 0.5
        %v857 = vmul.f32 %v851, 0.5
        %v858 = vmul.f32 %v854, 1.442695
        %v859 = vpow.pop %v858
        %v860 = vmul.f32 %v855, 1.442695
        %v861 = vpow.pop %v860
        %v862 = vmul.f32 %v856, 1.442695
        %v863 = vpow.pop %v862
        %v864 = vmul.f32 %v857, 1.442695
        %v865 = vpow.pop %v864
        %v866 = vld [vmem:[%s466] sm:$0xff]
        %v867 = vld [vmem:[%s466 + $0x8] sm:$0xff]
        %v868 = vld [vmem:[%s466 + $0x10] sm:$0xff]
        %v869 = vld [vmem:[%s466 + $0x18] sm:$0xff]
        %874 = vrot.lane.b32.xlu0 %v859, 64
        %v875 = vpop.permute.xlu0 %874
        %876 = vrot.lane.b32.xlu0 %v861, 64
        %v877 = vpop.permute.xlu0 %876
        %878 = vrot.lane.b32.xlu0 %v863, 64
        %v879 = vpop.permute.xlu0 %878
        %880 = vrot.lane.b32.xlu0 %v865, 64
        %v881 = vpop.permute.xlu0 %880
        %v886 = vmul.f32 %v866, %v875
        %v887 = vmul.f32 %v867, %v877
        %v888 = vmul.f32 %v868, %v879
        %v889 = vmul.f32 %v869, %v881
        %v890 = vadd.f32 %v840, %v886
        %v891 = vadd.f32 %v843, %v887
        %v892 = vadd.f32 %v848, %v888
        %v893 = vadd.f32 %v851, %v889
        %v894 = vpack.c.bf16 %v891, %v890
        %v895 = vpack.c.bf16 %v893, %v892
        %v896 = vld [vmem:[#allocation8] sm:$0xf]
        %v897 = vld [vmem:[#allocation8 + $0x4] sm:$0xf]
        %v898 = vld [vmem:[#allocation8 + $0x8] sm:$0xf]
        %v899 = vld [vmem:[#allocation8 + $0xc] sm:$0xf]
        %v900 = vld [vmem:[#allocation8 + $0x10] sm:$0xf]
        %v901 = vld [vmem:[#allocation8 + $0x14] sm:$0xf]
        %v902 = vld [vmem:[#allocation8 + $0x18] sm:$0xf]
        %v903 = vld [vmem:[#allocation8 + $0x1c] sm:$0xf]
        %v904 = vld [vmem:[%s6] sm:$0x1]
        %v906 = vlaneseq
        %v907 = vshrl.u32 %v906, 7
        %v908 = vsub.s32 0, %v907
        %v909 = vrot.slane %v904, %v908
        %v919 = vunpack.c.l.b16 %v896
        %v920 = vunpack.c.l.b16 %v897
        %v921 = vunpack.c.l.b16 %v898
        %v922 = vunpack.c.l.b16 %v899
        %v923 = vunpack.c.l.b16 %v900
        %v924 = vunpack.c.l.b16 %v901
        %v925 = vunpack.c.l.b16 %v902
        %v926 = vunpack.c.l.b16 %v903
        %v927 = vpack.c.b16 %v920, %v919
        %v928 = vpack.c.b16 %v922, %v921
        %v929 = vpack.c.b16 %v924, %v923
        %v930 = vpack.c.b16 %v926, %v925
        %vm935 = vcmask 523264
        %v937 = vsel %vm935, %v894, 0
        %v940 = vsel %vm935, %v895, 0
        %942 = vmatprep.subr.bf16.mxu0 0
        %943 = vmatpush1.bf16.msra.mxu0 %v927
        %944 = vmatprep.subr.bf16.mxu0 0
        %945 = vmatpush1.bf16.msra.mxu0 %v928
        %946 = vmatprep.subr.bf16.mxu0 0
        %947 = vmatpush1.bf16.msra.mxu0 %v929
        %948 = vmatprep.subr.bf16.mxu0 0
        %949 = vmatpush1.bf16.msra.mxu0 %v930
        %950 = vmatprep.subr.bf16.mxu0 0
        %951 = vmatpush1.bf16.msra.mxu0 0
        %952 = vmatprep.subr.bf16.mxu0 0
        %953 = vmatpush1.bf16.msra.mxu0 0
        %954 = vmatprep.subr.bf16.mxu0 0
        %955 = vmatpush1.bf16.msra.mxu0 0
        %956 = vmatprep.subr.bf16.mxu0 0
        %957 = vmatpush1.bf16.msra.mxu0 0
        %958 = vmatprep.subr.bf16.mxu0 0
        %959 = vmatpush1.bf16.msra.mxu0 0
        %960 = vmatprep.subr.bf16.mxu0 0
        %961 = vmatpush1.bf16.msra.mxu0 0
        %962 = vmatprep.subr.bf16.mxu0 0
        %963 = vmatpush1.bf16.msra.mxu0 0
        %964 = vmatprep.subr.bf16.mxu0 0
        %965 = vmatpush1.bf16.msra.mxu0 0
        %966 = vmatprep.subr.bf16.mxu0 0
        %967 = vmatpush1.bf16.msra.mxu0 0
        %968 = vmatprep.subr.bf16.mxu0 0
        %969 = vmatpush1.bf16.msra.mxu0 0
        %970 = vmatprep.subr.bf16.mxu0 0
        %971 = vmatpush1.bf16.msra.mxu0 0
        %972 = vmatprep.subr.bf16.mxu0 0
        %973 = vmatpush1.bf16.msra.mxu0 0
        %974 = vmatprep.mubr.bf16.mxu0 0
        %975 = vmatmul.mubr.bf16.gmra.mrb[0].mxu0 %v937
        %v976 = vpop.f32.mrb[0].mxu0
        %v977 = vadd.f32 %v909, %v976
        %v978 = vpop.f32.mrb[0].mxu0
        %v979 = vpop.f32.mrb[0].mxu0
        %v980 = vadd.f32 %v909, %v979
        %v981 = vpop.f32.mrb[0].mxu0
        %982 = vmatprep.mubr.bf16.mxu0 0
        %983 = vmatmul.mubr.bf16.gmra.mrb[0].mxu0 %v940
        %v984 = vpop.f32.mrb[0].mxu0
        %v985 = vadd.f32 %v909, %v984
        %v986 = vpop.f32.mrb[0].mxu0
        %v987 = vpop.f32.mrb[0].mxu0
        %v988 = vadd.f32 %v909, %v987
        %v989 = vpop.f32.mrb[0].mxu0
        %990 = vdwg.mxu0
        %v991 = vmax.f32 %v977, 0.0
        %v992 = vmax.f32 %v980, 0.0
        %v993 = vmax.f32 %v985, 0.0
        %v994 = vmax.f32 %v988, 0.0
        %v995 = vpack.c.bf16 %v992, %v991
        %v996 = vpack.c.bf16 %v994, %v993
        %v997 = vld [vmem:[#allocation10] sm:$0xff]
        %v998 = vld [vmem:[#allocation10 + $0x8] sm:$0xff]
        %v999 = vld [vmem:[#allocation10 + $0x10] sm:$0xff]
        %v1000 = vld [vmem:[#allocation10 + $0x18] sm:$0xff]
        %v1001 = vld [vmem:[#allocation10 + $0x20] sm:$0xff]
        %v1002 = vld [vmem:[#allocation10 + $0x28] sm:$0xff]
        %v1003 = vld [vmem:[#allocation10 + $0x30] sm:$0xff]
        %v1004 = vld [vmem:[#allocation10 + $0x38] sm:$0xff]
        %v1005 = vld [vmem:[#allocation10 + $0x40] sm:$0xff]
        %v1006 = vld [vmem:[#allocation10 + $0x48] sm:$0xff]
        %v1007 = vld [vmem:[#allocation10 + $0x50] sm:$0xff]
        %v1008 = vld [vmem:[#allocation10 + $0x58] sm:$0xff]
        %v1009 = vld [vmem:[#allocation10 + $0x60] sm:$0xff]
        %v1010 = vld [vmem:[#allocation10 + $0x68] sm:$0xff]
        %v1011 = vld [vmem:[#allocation10 + $0x70] sm:$0xff]
        %v1012 = vld [vmem:[#allocation10 + $0x78] sm:$0xff]
        %v1013 = vld [vmem:[%s8] sm:$0x3]
        %v1015 = vlaneseq
        %v1016 = vshrl.u32 %v1015, 7
        %v1017 = vsub.s32 0, %v1016
        %v1018 = vrot.slane %v1013, %v1017
        %v1019 = vlaneseq
        %v1020 = vshrl.u32 %v1019, 7
        %v1021 = vsub.s32 1, %v1020
        %v1022 = vrot.slane %v1013, %v1021
        %v1041 = vunpack.c.l.b16 %v997
        %v1042 = vunpack.c.h.b16 %v997
        %v1043 = vunpack.c.l.b16 %v998
        %v1044 = vunpack.c.h.b16 %v998
        %v1045 = vunpack.c.l.b16 %v999
        %v1046 = vunpack.c.h.b16 %v999
        %v1047 = vunpack.c.l.b16 %v1000
        %v1048 = vunpack.c.h.b16 %v1000
        %v1049 = vunpack.c.l.b16 %v1001
        %v1050 = vunpack.c.h.b16 %v1001
        %v1051 = vunpack.c.l.b16 %v1002
        %v1052 = vunpack.c.h.b16 %v1002
        %v1053 = vunpack.c.l.b16 %v1003
        %v1054 = vunpack.c.h.b16 %v1003
        %v1055 = vunpack.c.l.b16 %v1004
        %v1056 = vunpack.c.h.b16 %v1004
        %v1057 = vunpack.c.l.b16 %v1005
        %v1058 = vunpack.c.h.b16 %v1005
        %v1059 = vunpack.c.l.b16 %v1006
        %v1060 = vunpack.c.h.b16 %v1006
        %v1061 = vunpack.c.l.b16 %v1007
        %v1062 = vunpack.c.h.b16 %v1007
        %v1063 = vunpack.c.l.b16 %v1008
        %v1064 = vunpack.c.h.b16 %v1008
        %v1065 = vunpack.c.l.b16 %v1009
        %v1066 = vunpack.c.h.b16 %v1009
        %v1067 = vunpack.c.l.b16 %v1010
        %v1068 = vunpack.c.h.b16 %v1010
        %v1069 = vunpack.c.l.b16 %v1011
        %v1070 = vunpack.c.h.b16 %v1011
        %v1071 = vunpack.c.l.b16 %v1012
        %v1072 = vunpack.c.h.b16 %v1012
        %v1073 = vpack.c.b16 %v1043, %v1041
        %v1074 = vpack.c.b16 %v1044, %v1042
        %v1075 = vpack.c.b16 %v1047, %v1045
        %v1076 = vpack.c.b16 %v1048, %v1046
        %v1077 = vpack.c.b16 %v1051, %v1049
        %v1078 = vpack.c.b16 %v1052, %v1050
        %v1079 = vpack.c.b16 %v1055, %v1053
        %v1080 = vpack.c.b16 %v1056, %v1054
        %v1081 = vpack.c.b16 %v1059, %v1057
        %v1082 = vpack.c.b16 %v1060, %v1058
        %v1083 = vpack.c.b16 %v1063, %v1061
        %v1084 = vpack.c.b16 %v1064, %v1062
        %v1085 = vpack.c.b16 %v1067, %v1065
        %v1086 = vpack.c.b16 %v1068, %v1066
        %v1087 = vpack.c.b16 %v1071, %v1069
        %v1088 = vpack.c.b16 %v1072, %v1070
        %1105 = vmatprep.subr.bf16.mxu0 %v1074
        %1106 = vmatpush1.bf16.msra.mxu0 %v1073
        %1107 = vmatprep.subr.bf16.mxu0 %v1076
        %1108 = vmatpush1.bf16.msra.mxu0 %v1075
        %1109 = vmatprep.subr.bf16.mxu0 %v1078
        %1110 = vmatpush1.bf16.msra.mxu0 %v1077
        %1111 = vmatprep.subr.bf16.mxu0 %v1080
        %1112 = vmatpush1.bf16.msra.mxu0 %v1079
        %1113 = vmatprep.subr.bf16.mxu0 %v1082
        %1114 = vmatpush1.bf16.msra.mxu0 %v1081
        %1115 = vmatprep.subr.bf16.mxu0 %v1084
        %1116 = vmatpush1.bf16.msra.mxu0 %v1083
        %1117 = vmatprep.subr.bf16.mxu0 %v1086
        %1118 = vmatpush1.bf16.msra.mxu0 %v1085
        %1119 = vmatprep.subr.bf16.mxu0 %v1088
        %1120 = vmatpush1.bf16.msra.mxu0 %v1087
        %1121 = vmatprep.subr.bf16.mxu0 0
        %1122 = vmatpush1.bf16.msra.mxu0 0
        %1123 = vmatprep.subr.bf16.mxu0 0
        %1124 = vmatpush1.bf16.msra.mxu0 0
        %1125 = vmatprep.subr.bf16.mxu0 0
        %1126 = vmatpush1.bf16.msra.mxu0 0
        %1127 = vmatprep.subr.bf16.mxu0 0
        %1128 = vmatpush1.bf16.msra.mxu0 0
        %1129 = vmatprep.subr.bf16.mxu0 0
        %1130 = vmatpush1.bf16.msra.mxu0 0
        %1131 = vmatprep.subr.bf16.mxu0 0
        %1132 = vmatpush1.bf16.msra.mxu0 0
        %1133 = vmatprep.subr.bf16.mxu0 0
        %1134 = vmatpush1.bf16.msra.mxu0 0
        %1135 = vmatprep.subr.bf16.mxu0 0
        %1136 = vmatpush1.bf16.msra.mxu0 0
        %1137 = vmatprep.mubr.bf16.mxu0 0
        %1138 = vmatmul.mubr.bf16.gmra.mrb[0].mxu0 %v995
        %v1139 = vpop.f32.mrb[0].mxu0
        %v1140 = vadd.f32 %v1018, %v1139
        %v1141 = vpop.f32.mrb[0].mxu0
        %v1142 = vadd.f32 %v1022, %v1141
        %v1143 = vpop.f32.mrb[0].mxu0
        %v1144 = vadd.f32 %v1018, %v1143
        %v1145 = vpop.f32.mrb[0].mxu0
        %v1146 = vadd.f32 %v1022, %v1145
        %1147 = vmatprep.mubr.bf16.mxu0 0
        %1148 = vmatmul.mubr.bf16.gmra.mrb[0].mxu0 %v996
        %v1149 = vpop.f32.mrb[0].mxu0
        %v1150 = vadd.f32 %v1018, %v1149
        %v1151 = vpop.f32.mrb[0].mxu0
        %v1152 = vadd.f32 %v1022, %v1151
        %v1153 = vpop.f32.mrb[0].mxu0
        %v1154 = vadd.f32 %v1018, %v1153
        %v1155 = vpop.f32.mrb[0].mxu0
        %v1156 = vadd.f32 %v1022, %v1155
        %1157 = vdwg.mxu0
        %1158 = vst [vmem:[%s507] sm:$0xff] %v1140
        %1159 = vst [vmem:[%s507 + $0x8] sm:$0xff] %v1142
        %1160 = vst [vmem:[%s507 + $0x10] sm:$0xff] %v1144
        %1161 = vst [vmem:[%s507 + $0x18] sm:$0xff] %v1146
        %1162 = vst [vmem:[%s507 + $0x20] sm:$0xff] %v1150
        %1163 = vst [vmem:[%s507 + $0x28] sm:$0xff] %v1152
        %1164 = vst [vmem:[%s507 + $0x30] sm:$0xff] %v1154
        %1165 = vst [vmem:[%s507 + $0x38] sm:$0xff] %v1156
        %1166 = vst [vmem:[%s514] sm:$0xff] %v840
        %1167 = vst [vmem:[%s514 + $0x8] sm:$0xff] %v843
        %1168 = vst [vmem:[%s514 + $0x10] sm:$0xff] %v848
        %1169 = vst [vmem:[%s514 + $0x18] sm:$0xff] %v851
        %s1170 = sand.u32 %s265, 1
        %s1171 = scalar_lea.sflag [#allocation4], %s1170
        %s1172 = sand.u32 %s265, 1
        %s1173 = smul.addr %s1172, 64
        %s1174 = scalar_lea.vmem [#allocation13], %s1173
        %s1175 = sand.u32 %s291, 1
        %s1176 = scalar_lea.sflag [#allocation15], %s1175
        %s1177 = sand.u32 %s291, 1
        %s1178 = smul.addr %s1177, 32
        %s1179 = scalar_lea.vmem [#allocation14], %s1178
        // Predicated region
        $region85: #{tpu_custom_call.1} parent=59 // pred_check
          %p1180 = pneg %p275
        $region86: #{tpu_custom_call.1} parent=59 // pred_check_branch
          %1182 = sbr.rel (%p1180) target = $region88
        $region87: #{tpu_custom_call.1} parent=59 // pred_region
          %s1183 = smul.u32 4, %s37
          %s1185 = ssub.s32 1024, 1024
          %1186 = vsyncadd %s1171, %s1185
          %s1187 = smul.addr %s1183, 2
          %s1188 = smul.addr %s1187, 128
          %s1189 = scalar_lea.hbm %s10, %s1188
          %s1190 = sshll.u32 %s1174, 4
          %s1191 = int_to_ptr.vmem [resolvable:$true] %s1190
          %1196 = dma.vmem_to_hbm [thread:$0]  %s1191, 1024, %s1189, %s1171, 256, 256, 16
        $region88: #{tpu_custom_call.1} parent=59 // pred_fallthru
          _
        // Predicated region
        $region89: #{tpu_custom_call.1} parent=59 // pred_check
          %p1197 = pneg %p301
        $region90: #{tpu_custom_call.1} parent=59 // pred_check_branch
          %1199 = sbr.rel (%p1197) target = $region92
        $region91: #{tpu_custom_call.1} parent=59 // pred_region
          %s1200 = smul.u32 4, %s37
          %s1202 = ssub.s32 512, 512
          %1203 = vsyncadd %s1176, %s1202
          %s1204 = smul.addr %s1200, 128
          %s1205 = scalar_lea.hbm %s11, %s1204
          %s1206 = sshll.u32 %s1179, 4
          %s1207 = int_to_ptr.vmem [resolvable:$true] %s1206
          %1212 = dma.vmem_to_hbm [thread:$0]  %s1207, 512, %s1205, %s1176, 128, 128, 8
        $region92: #{tpu_custom_call.1} parent=59 // pred_fallthru
          _
      $region60: #{tpu_custom_call.1} parent=5 // pred_fallthru
        _
      %p1213 = scmp.le.s32.totalorder 2, %s32
      // Predicated region
      $region93: #{tpu_custom_call.1} parent=5 // pred_check
        %p1214 = pneg %p1213
      $region94: #{tpu_custom_call.1} parent=5 // pred_check_branch
        %1216 = sbr.rel (%p1214) target = $region96
      $region95: #{tpu_custom_call.1} parent=5 // pred_region
        %s1217 = ssub.s32 %s32, 2
        // Predicated region
        $region97: #{tpu_custom_call.1} parent=95 // pred_check
          %p1218 = pneg %p281
        $region98: #{tpu_custom_call.1} parent=95 // pred_check_branch
          %1220 = sbr.rel (%p1218) target = $region100
        $region99: #{tpu_custom_call.1} parent=95 // pred_region
          %s1221 = sand.u32 %s266, 1
          %s1222 = scalar_lea.sflag [#allocation4], %s1221
          %s1223 = sand.u32 %s266, 1
          %s1224 = smul.addr %s1223, 64
          %s1225 = scalar_lea.vmem [#allocation13], %s1224
          %1226 = dma.done %s1222, 1024
        $region100: #{tpu_custom_call.1} parent=95 // pred_fallthru
          _
        // Predicated region
        $region101: #{tpu_custom_call.1} parent=95 // pred_check
          %p1227 = pneg %p307
        $region102: #{tpu_custom_call.1} parent=95 // pred_check_branch
          %1229 = sbr.rel (%p1227) target = $region104
        $region103: #{tpu_custom_call.1} parent=95 // pred_region
          %s1230 = sand.u32 %s292, 1
          %s1231 = scalar_lea.sflag [#allocation15], %s1230
          %s1232 = sand.u32 %s292, 1
          %s1233 = smul.addr %s1232, 32
          %s1234 = scalar_lea.vmem [#allocation14], %s1233
          %1235 = dma.done %s1231, 512
        $region104: #{tpu_custom_call.1} parent=95 // pred_fallthru
          _
      $region96: #{tpu_custom_call.1} parent=5 // pred_fallthru
        _
    $region6: #{tpu_custom_call.1} parent=1 // loop_footer
      %s36 = sadd.s32 1, %s32
    $region7: #{tpu_custom_call.1} parent=1 // loop_footer_branch
      %31 = sbr.rel target = $region3
    $region8: #{tpu_custom_call.1} parent=1 // loop_exit
      _
    %1236 = vsyncpa [#allocation3], 1
    %s1237 = scalar_lea.sflag [#allocation3], 1
    %1238 = vsyncpa %s1237, 1
    %1239 = vsyncpa [#allocation6], 1
    %1240 = vsyncpa [#allocation9], 1
    %1241 = vsyncpa [#allocation12], 1
    %s1242 = scalar_lea.sflag [#allocation12], 1
    %1243 = vsyncpa %s1242, 1
    %1244 = vsyncpa [#allocation4], 1
    %s1245 = scalar_lea.sflag [#allocation4], 1
    %1246 = vsyncpa %s1245, 1
    %1247 = vsyncpa [#allocation15], 1
    %s1248 = scalar_lea.sflag [#allocation15], 1
    %1249 = vsyncpa %s1248, 1

</llo_original>
